<compile_context>
chip_gen: v6e
topology: v6e:2x2x1
jax: 0.10.0
libtpu: 0.0.40
codegen_flags: <defaults>
</compile_context>

<pallas_src>
import jax
import jax.numpy as jnp
from jax import lax
from jax.experimental import pallas as pl
from jax.experimental.pallas import tpu as pltpu

_EPS = 1e-12                 # torch.nn.functional.normalize default eps
_EPS_SQ = _EPS * _EPS        # ~1e-24: still a normal f32 (min normal ~1.18e-38)
_LANE = 128


def _l2_norm_kernel(x_ref, o_ref):
    # Block is either (b_tile, C, s_tile, 128) or (b_tile, C, hw_tile); in both
    # layouts the channel axis is axis 1 and never mixes lane columns.
    xf = x_ref[...].astype(jnp.float32)
    ss = jnp.sum(xf * xf, axis=1, keepdims=True)
    # x / max(||x||, eps) == x * rsqrt(max(||x||^2, eps^2)); rsqrt runs on the
    # EUP, turning C*HW divides into broadcast multiplies.  Multiply in f32 and
    # cast once at the store (better low-precision accuracy, zero extra cost
    # since the kernel is memory-bound).
    inv = lax.rsqrt(jnp.maximum(ss, _EPS_SQ))
    o_ref[...] = (xf * inv).astype(o_ref.dtype)


def _round_up(a, m):
    return ((a + m - 1) // m) * m


def _sublane_granule(dtype):
    # Native sublane tile: 8 rows for 4-byte dtypes, 16 for bf16, 32 for int8/fp8.
    itemsize = jnp.dtype(dtype).itemsize
    return 8 * max(1, 4 // max(1, itemsize))


def _vmem_capacity_bytes():
    try:
        return int(pltpu.get_tpu_info().vmem_capacity_bytes)
    except Exception:
        return 64 * 1024 * 1024   # conservative default (v7x per-TensorCore)


def l2_norm(x):
    """L2-normalize along dim=1 of an NCHW tensor (== F.normalize(x, p=2, dim=1))."""
    B, C, H, W = x.shape
    HW = H * W
    itemsize = jnp.dtype(x.dtype).itemsize
    granule = _sublane_granule(x.dtype)
    cap = _vmem_capacity_bytes()

    # Per-input-block budget, generation aware: ~6 MiB on 128 MiB parts
    # (v5e/v6e), ~4 MiB on 64 MiB parts (v7x).
    budget = min(6 * 1024 * 1024, cap // 16)

    n_rows = pl.cdiv(HW, _LANE)            # number of 128-lane rows per (b,)
    row_bytes = C * _LANE * itemsize       # one lane-row across all channels
    max_rows = max(1, budget // row_bytes)
    aligned = (HW % _LANE) == 0

    if n_rows <= max_rows:
        # Whole spatial extent in one block; fold batch elements together to
        # amortize the ~0.35 us per-grid-step overhead on small shapes.
        s_tile = n_rows
        b_tile = max(1, min(B, max_rows // n_rows))
    else:
        # Balanced row tiles instead of a fixed tile + padding: the only waste
        # is < granule masked rows in the final edge block.
        max_rows_aligned = max(granule, (max_rows // granule) * granule)
        n_tiles = pl.cdiv(n_rows, max_rows_aligned)
        s_tile = min(n_rows, _round_up(pl.cdiv(n_rows, n_tiles), granule))
        b_tile = 1

    grid_b = pl.cdiv(B, b_tile)
    grid_s = pl.cdiv(n_rows, s_tile)

    # v7x megacore: keep >= 2 parallel grid steps so both TensorCores get work.
    if grid_b * grid_s == 1:
        if B >= 2:
            b_tile = pl.cdiv(B, 2)
            grid_b = pl.cdiv(B, b_tile)          # == 2
        elif n_rows > granule:
            s_tile = _round_up(pl.cdiv(n_rows, 2), granule)
            grid_s = pl.cdiv(n_rows, s_tile)     # == 2

    cost = pl.CostEstimate(
        flops=3 * B * C * HW,
        transcendentals=B * HW,
        bytes_accessed=2 * B * C * HW * itemsize,
    )

    if aligned:
        # Lane-dense 4-D view: C is an outer vreg axis (VALU-only reduction).
        x_in = x.reshape(B, C, n_rows, _LANE)
        block = (b_tile, C, s_tile, _LANE)
        index_map = lambda b, s: (b, 0, s, 0)
        out_shape = jax.ShapeDtypeStruct((B, C, n_rows, _LANE), x.dtype)
        block_bytes = b_tile * C * s_tile * _LANE * itemsize
    else:
        # Ragged HW: unpadded [B, C, HW]; the last block along HW (and along B)
        # is handled by Pallas edge masking -> no wrapper pad / output slice.
        x_in = x.reshape(B, C, HW)
        hw_tile = HW if grid_s == 1 else s_tile * _LANE
        block = (b_tile, C, hw_tile)
        index_map = lambda b, s: (b, 0, s)
        out_shape = jax.ShapeDtypeStruct((B, C, HW), x.dtype)
        grid_s = pl.cdiv(HW, hw_tile)
        block_bytes = b_tile * C * hw_tile * itemsize

    # Size scoped VMEM to the actual footprint: in + out blocks, double
    # buffered, plus compiler slack; stay well under physical capacity.
    vmem_limit = int(min(cap * 3 // 4,
                         max(32 * 1024 * 1024,
                             4 * block_bytes + 4 * 1024 * 1024)))

    out = pl.pallas_call(
        _l2_norm_kernel,
        out_shape=out_shape,
        grid_spec=pltpu.PrefetchScalarGridSpec(
            num_scalar_prefetch=0,
            grid=(grid_b, grid_s),
            in_specs=[pl.BlockSpec(block, index_map)],
            out_specs=pl.BlockSpec(block, index_map),
        ),
        compiler_params=pltpu.CompilerParams(
            dimension_semantics=("parallel", "parallel"),
            vmem_limit_bytes=vmem_limit,
        ),
        cost_estimate=cost,
    )(x_in)

    # TODO(synk): very large C (f32 C >~ 4k) would need a C-tiled two-pass path
    # with a sum-of-squares accumulator; not needed for this module's shapes.
    return out.reshape(B, C, H, W)


def _reference(x):
    xf = x.astype(jnp.float32)
    norm = jnp.sqrt(jnp.sum(xf * xf, axis=1, keepdims=True))
    return (xf / jnp.maximum(norm, _EPS)).astype(x.dtype)


if __name__ == "__main__":
    key = jax.random.PRNGKey(0)

    # Primary shape implied by the module's NCHW usage: batch=2, channels=4, 16x16.
    x = jax.random.normal(key, (2, 4, 16, 16), dtype=jnp.float32)
    out = l2_norm(x)
    jax.block_until_ready(out)
    assert out.shape == x.shape
    assert jnp.allclose(out, _reference(x), atol=1e-5, rtol=1e-4)

    # Secondary check: ragged H*W (not a multiple of 128) -> edge-masked 3-D
    # path, plus a batch edge block (B=3, b_tile=2).
    x2 = jax.random.normal(jax.random.PRNGKey(1), (3, 4, 6, 10), dtype=jnp.float32)
    out2 = l2_norm(x2)
    jax.block_until_ready(out2)
    assert out2.shape == x2.shape
    assert jnp.allclose(out2, _reference(x2), atol=1e-5, rtol=1e-4)

    print("KERNEL_OK")
</pallas_src>

<mosaic_0001>
module attributes {stable_mosaic.version = 11 : i64} {
  func.func @_l2_norm_kernel(%arg0: i32, %arg1: i32, %arg2: memref<1x4x2x128xf32, #tpu.memory_space<vmem>>, %arg3: memref<1x4x2x128xf32, #tpu.memory_space<vmem>>) attributes {dimension_semantics = [#tpu.dimension_semantics<parallel>, #tpu.dimension_semantics<parallel>], iteration_bounds = array<i64: 2, 1>, scalar_prefetch = 0 : i64, scratch_operands = 0 : i64, tpu.core_type = #tpu.core_type<tc>, window_params = [{transform_indices = @transform_0, window_bounds = array<i64: 1, 4, 2, 128>}, {transform_indices = @transform_1, window_bounds = array<i64: 1, 4, 2, 128>}]} {
    %c0 = arith.constant 0 : index
    %c0_0 = arith.constant 0 : index
    %c0_1 = arith.constant 0 : index
    %c0_2 = arith.constant 0 : index
    %0 = vector.load %arg2[%c0, %c0_0, %c0_1, %c0_2] : memref<1x4x2x128xf32, #tpu.memory_space<vmem>>, vector<1x4x2x128xf32>
    %1 = arith.mulf %0, %0 : vector<1x4x2x128xf32>
    %cst = arith.constant dense<0.000000e+00> : vector<1x2x128xf32>
    %2 = vector.multi_reduction <add>, %1, %cst [1] : vector<1x4x2x128xf32> to vector<1x2x128xf32>
    %3 = vector.shape_cast %2 : vector<1x2x128xf32> to vector<1x1x2x128xf32>
    %cst_3 = arith.constant 1.000000e-24 : f32
    %4 = vector.broadcast %cst_3 : f32 to vector<1x1x2x128xf32>
    %5 = arith.maximumf %3, %4 : vector<1x1x2x128xf32>
    %6 = math.rsqrt %5 : vector<1x1x2x128xf32>
    %7 = vector.broadcast %6 : vector<1x1x2x128xf32> to vector<1x4x2x128xf32>
    %8 = arith.mulf %0, %7 : vector<1x4x2x128xf32>
    %c0_4 = arith.constant 0 : index
    %c0_5 = arith.constant 0 : index
    %c0_6 = arith.constant 0 : index
    %c0_7 = arith.constant 0 : index
    %9 = vector.load %arg3[%c0_4, %c0_5, %c0_6, %c0_7] : memref<1x4x2x128xf32, #tpu.memory_space<vmem>>, vector<1x4x2x128xf32>
    tpu.vector_store %arg3[%c0_4, %c0_5, %c0_6, %c0_7], %8 {strides = array<i32>} : memref<1x4x2x128xf32, #tpu.memory_space<vmem>>, vector<1x4x2x128xf32>,
    return
  }
  func.func @transform_0(%arg0: i32, %arg1: i32) -> (i32, i32, i32, i32) {
    %c0_i32 = arith.constant 0 : i32
    %c0_i32_0 = arith.constant 0 : i32
    %c0_i32_1 = arith.constant 0 : i32
    return %arg0, %c0_i32, %arg1, %c0_i32_0 : i32, i32, i32, i32
  }
  func.func @transform_1(%arg0: i32, %arg1: i32) -> (i32, i32, i32, i32) {
    %c0_i32 = arith.constant 0 : i32
    %c0_i32_0 = arith.constant 0 : i32
    %c0_i32_1 = arith.constant 0 : i32
    return %arg0, %c0_i32, %arg1, %c0_i32_0 : i32, i32, i32, i32
  }
}

</mosaic_0001>

<llo_original>
// kernel: tpu_custom_call.1
$region0: #{tpu_custom_call.1}
  #allocation0 [shape = 'u32[]', space=smem, size = 0x4, offset = 0x4, fixed_abs, tag = 'smem constant byte address 0x4 - core index']
  #allocation1 [shape = 'u32[144,128]{1,0:T(1,128)}', space=vmem, size = 0x12000, scoped, tag = 'internal scratch']
  %s0 = inlined_call_operand.hbm [shape: f32[2,4,2,128], index: 0, kind: input, shape index: {}]
  %s1 = inlined_call_operand.hbm [shape: f32[2,4,2,128], index: 1, kind: output, shape index: {}]
  %s2 = sld [smem:[#allocation0]]
  $region41: #{tpu_custom_call.1} parent=0
    _
  %s4 = ssub.s32 1, %s2
  %s5 = scalar_select 0, %s4, %s2
  $region1: #{tpu_custom_call.1} parent=0
    #allocation2 [shape = 'u8[8192]{0}', space=vmem, size = 0x2000, scoped, tag = 'input window, operand 0']
    #allocation3 [shape = 's32[2]{0}', space=sflag, size = 0x8, scoped, tag = 'scoped memory for tpu_custom_call.1']
    #allocation4 [shape = 's32[2]{0}', space=sflag, size = 0x8, scoped, tag = 'scoped memory for tpu_custom_call.1']
    #allocation5 [shape = 'u8[8192]{0}', space=vmem, size = 0x2000, scoped, tag = 'output window, operand 0']
    %6 = vsyncpa [#allocation3], 0
    %s7 = scalar_lea.sflag [#allocation3], 1
    %8 = vsyncpa %s7, 0
    %9 = vsyncpa [#allocation4], 0
    %s10 = scalar_lea.sflag [#allocation4], 1
    %11 = vsyncpa %s10, 0
    loop: start=0, step=1, limit=4
    $region2: #{tpu_custom_call.1} parent=1 // loop_pre_header
      _
    $region3: #{tpu_custom_call.1} parent=1 // loop_header
      %s13 = sphi 0, %s17
      %p14 = scmp.ge.s32.totalorder %s13, 4
      %s20 = sphi 0, %s32
      %s21 = sphi 0, %s28
      %s22 = sphi 0, %s20
      %s23 = sphi 0, %s21
      %s24 = sphi 0, %s22
      %s25 = sphi 0, %s23
      %s37 = sphi 0, %s39
      %s40 = sphi 0, %s37
      %s41 = sphi 0, %s40
      %s57 = sphi 0, %s41
      %s65 = sphi 0, %s67
      %s68 = sphi 0, %s65
      %s69 = sphi 0, %s68
      %s85 = sphi 0, %s69
    $region4: #{tpu_custom_call.1} parent=1 // loop_header_branch
      %16 = sbr.rel (%p14) target = $region8
    $region5: #{tpu_custom_call.1} parent=1 // loop_body
      %s18 = ssub.s32 %s13, 1
      %s19 = ssub.s32 %s13, 2
      %s26 = sadd.s32 1, %s21
      %p27 = scmp.ge.s32.totalorder %s26, 1
      %s28 = scalar_select %p27, 0, %s26
      %s29 = sadd.s32 1, %s20
      %s30 = scalar_select %p27, %s29, %s20
      %p31 = scmp.ge.s32.totalorder %s30, 2
      %s32 = scalar_select %p31, 0, %s30
      %s33 = ssub.s32 %s20, %s32
      %s34 = ssub.s32 %s21, %s28
      %s35 = sor.u32 %s33, %s34
      %p36 = scmp.eq.s32.totalorder %s35, 0
      %s38 = sadd.s32 %s37, 1
      %s39 = scalar_select %p36, %s37, %s38
      %p42 = pneg %p36
      %p43 = scmp.eq.s32.totalorder %s13, 1
      %p44 = por %p42, %p43
      %p45 = scmp.ne.s32.totalorder %s37, %s40
      %p46 = scmp.eq.s32.totalorder %s13, 0
      %p47 = por %p45, %p46
      %p48 = scmp.ne.s32.totalorder %s37, %s40
      %p49 = scmp.eq.s32.totalorder %s18, 1
      %p50 = por %p48, %p49
      %p51 = scmp.ne.s32.totalorder %s40, %s41
      %p52 = scmp.eq.s32.totalorder %s18, 0
      %p53 = por %p51, %p52
      %p54 = scmp.ne.s32.totalorder %s40, %s41
      %p55 = scmp.eq.s32.totalorder %s19, 1
      %p56 = por %p54, %p55
      %p58 = scmp.ne.s32.totalorder %s41, %s57
      %p59 = scmp.eq.s32.totalorder %s19, 0
      %p60 = por %p58, %p59
      %s61 = ssub.s32 %s20, %s32
      %s62 = ssub.s32 %s21, %s28
      %s63 = sor.u32 %s61, %s62
      %p64 = scmp.eq.s32.totalorder %s63, 0
      %s66 = sadd.s32 %s65, 1
      %s67 = scalar_select %p64, %s65, %s66
      %p70 = pneg %p64
      %p71 = scmp.eq.s32.totalorder %s13, 1
      %p72 = por %p70, %p71
      %p73 = scmp.ne.s32.totalorder %s65, %s68
      %p74 = scmp.eq.s32.totalorder %s13, 0
      %p75 = por %p73, %p74
      %p76 = scmp.ne.s32.totalorder %s65, %s68
      %p77 = scmp.eq.s32.totalorder %s18, 1
      %p78 = por %p76, %p77
      %p79 = scmp.ne.s32.totalorder %s68, %s69
      %p80 = scmp.eq.s32.totalorder %s18, 0
      %p81 = por %p79, %p80
      %p82 = scmp.ne.s32.totalorder %s68, %s69
      %p83 = scmp.eq.s32.totalorder %s19, 1
      %p84 = por %p82, %p83
      %p86 = scmp.ne.s32.totalorder %s69, %s85
      %p87 = scmp.eq.s32.totalorder %s19, 0
      %p88 = por %p86, %p87
      %p89 = scmp.le.s32.totalorder 1, %s13
      %p90 = scmp.lt.s32.totalorder %s13, 3
      %p91 = pnand %p89, %p90
      %p92 = pneg %p91
      // Predicated region
      $region9: #{tpu_custom_call.1} parent=5 // pred_check
        _
      $region10: #{tpu_custom_call.1} parent=5 // pred_check_branch
        %94 = sbr.rel (%p91) target = $region12
      $region11: #{tpu_custom_call.1} parent=5 // pred_region
        %s95 = ssub.s32 %s13, 1
      $region12: #{tpu_custom_call.1} parent=5 // pred_fallthru
        _
      %p96 = scmp.lt.s32.totalorder %s13, 2
      // Predicated region
      $region13: #{tpu_custom_call.1} parent=5 // pred_check
        %p97 = pneg %p96
      $region14: #{tpu_custom_call.1} parent=5 // pred_check_branch
        %99 = sbr.rel (%p97) target = $region16
      $region15: #{tpu_custom_call.1} parent=5 // pred_region
        // Predicated region
        $region17: #{tpu_custom_call.1} parent=15 // pred_check
          %p100 = pneg %p47
        $region18: #{tpu_custom_call.1} parent=15 // pred_check_branch
          %102 = sbr.rel (%p100) target = $region20
        $region19: #{tpu_custom_call.1} parent=15 // pred_region
          %s103 = sand.u32 %s37, 1
          %s104 = scalar_lea.sflag [#allocation3], %s103
          %s105 = sand.u32 %s37, 1
          %s106 = smul.addr %s105, 8
          %s107 = scalar_lea.vmem [#allocation2], %s106
          %s109 = ssub.s32 128, 128
          %110 = vsyncadd %s104, %s109
          %s111 = smul.addr %s20, 4
          %s112 = sadd.s32 %s21, %s111
          %s113 = smul.addr %s112, 32
          %s114 = scalar_lea.hbm %s0, %s113
          %s115 = sshll.u32 %s107, 4
          %s116 = int_to_ptr.vmem [resolvable:$true] %s115
          %121 = dma.hbm_to_vmem [thread:$0]  %s114, 128, %s116, %s104, 32, 32, 2
        $region20: #{tpu_custom_call.1} parent=15 // pred_fallthru
          _
      $region16: #{tpu_custom_call.1} parent=5 // pred_fallthru
        _
      %p122 = scmp.le.s32.totalorder 1, %s13
      %p123 = scmp.lt.s32.totalorder %s13, 3
      %p124 = pnand %p122, %p123
      %p125 = pneg %p124
      // Predicated region
      $region21: #{tpu_custom_call.1} parent=5 // pred_check
        _
      $region22: #{tpu_custom_call.1} parent=5 // pred_check_branch
        %127 = sbr.rel (%p124) target = $region24
      $region23: #{tpu_custom_call.1} parent=5 // pred_region
        %s128 = ssub.s32 %s13, 1
        %s129 = sand.u32 %s40, 1
        %s130 = scalar_lea.sflag [#allocation3], %s129
        %s131 = sand.u32 %s40, 1
        %s132 = smul.addr %s131, 8
        %s133 = scalar_lea.vmem [#allocation2], %s132
        // Predicated region
        $region25: #{tpu_custom_call.1} parent=23 // pred_check
          %p134 = pneg %p53
        $region26: #{tpu_custom_call.1} parent=23 // pred_check_branch
          %136 = sbr.rel (%p134) target = $region28
        $region27: #{tpu_custom_call.1} parent=23 // pred_region
          %137 = dma.done %s130, 128
        $region28: #{tpu_custom_call.1} parent=23 // pred_fallthru
          _
        %s138 = sand.u32 %s40, 1
        %s139 = scalar_lea.sflag [#allocation3], %s138
        %s140 = sand.u32 %s40, 1
        %s141 = smul.addr %s140, 8
        %s142 = scalar_lea.vmem [#allocation2], %s141
        %p143 = pneg %p53
        %p144 = pneg %p50
        %p145 = pneg %p81
        %p146 = pneg %p78
        %s147 = sand.u32 %s68, 1
        %s148 = scalar_lea.sflag [#allocation4], %s147
        %s149 = sand.u32 %s68, 1
        %s150 = smul.addr %s149, 8
        %s151 = scalar_lea.vmem [#allocation5], %s150
        %v152 = vld [vmem:[%s133] sm:$0x3]
        %v153 = vld [vmem:[%s133 + $0x2] sm:$0x3]
        %v154 = vld [vmem:[%s133 + $0x4] sm:$0x3]
        %v155 = vld [vmem:[%s133 + $0x6] sm:$0x3]
        %v156 = vmul.f32 %v152, %v152
        %v157 = vmul.f32 %v153, %v153
        %v158 = vmul.f32 %v154, %v154
        %v159 = vmul.f32 %v155, %v155
        %vm160 = vcmask 1041408
        %v161 = vsel %vm160, %v156, 0.0
        %v162 = vsel %vm160, %v157, 0.0
        %v163 = vadd.f32 %v161, %v162
        %v164 = vsel %vm160, %v158, 0.0
        %v165 = vadd.f32 %v163, %v164
        %v166 = vsel %vm160, %v159, 0.0
        %v167 = vadd.f32 %v165, %v166
        %v168 = vmax.f32 %v167, 1e-24
        %v169 = vrsqrt.pop %v168
        %v170 = vmul.f32 %v152, %v169
        %v171 = vmul.f32 %v153, %v169
        %v172 = vmul.f32 %v154, %v169
        %v173 = vmul.f32 %v155, %v169
        %174 = vst [vmem:[%s151] sm:$0x3] %v170
        %175 = vst [vmem:[%s151 + $0x2] sm:$0x3] %v171
        %176 = vst [vmem:[%s151 + $0x4] sm:$0x3] %v172
        %177 = vst [vmem:[%s151 + $0x6] sm:$0x3] %v173
        %s178 = sand.u32 %s68, 1
        %s179 = scalar_lea.sflag [#allocation4], %s178
        %s180 = sand.u32 %s68, 1
        %s181 = smul.addr %s180, 8
        %s182 = scalar_lea.vmem [#allocation5], %s181
        // Predicated region
        $region29: #{tpu_custom_call.1} parent=23 // pred_check
          %p183 = pneg %p78
        $region30: #{tpu_custom_call.1} parent=23 // pred_check_branch
          %185 = sbr.rel (%p183) target = $region32
        $region31: #{tpu_custom_call.1} parent=23 // pred_region
          %s187 = ssub.s32 128, 128
          %188 = vsyncadd %s179, %s187
          %s189 = smul.addr %s22, 4
          %s190 = sadd.s32 %s23, %s189
          %s191 = smul.addr %s190, 32
          %s192 = scalar_lea.hbm %s1, %s191
          %s193 = sshll.u32 %s182, 4
          %s194 = int_to_ptr.vmem [resolvable:$true] %s193
          %199 = dma.vmem_to_hbm [thread:$0]  %s194, 128, %s192, %s179, 32, 32, 2
        $region32: #{tpu_custom_call.1} parent=23 // pred_fallthru
          _
      $region24: #{tpu_custom_call.1} parent=5 // pred_fallthru
        _
      %p200 = scmp.le.s32.totalorder 2, %s13
      // Predicated region
      $region33: #{tpu_custom_call.1} parent=5 // pred_check
        %p201 = pneg %p200
      $region34: #{tpu_custom_call.1} parent=5 // pred_check_branch
        %203 = sbr.rel (%p201) target = $region36
      $region35: #{tpu_custom_call.1} parent=5 // pred_region
        %s204 = ssub.s32 %s13, 2
        // Predicated region
        $region37: #{tpu_custom_call.1} parent=35 // pred_check
          %p205 = pneg %p84
        $region38: #{tpu_custom_call.1} parent=35 // pred_check_branch
          %207 = sbr.rel (%p205) target = $region40
        $region39: #{tpu_custom_call.1} parent=35 // pred_region
          %s208 = sand.u32 %s69, 1
          %s209 = scalar_lea.sflag [#allocation4], %s208
          %s210 = sand.u32 %s69, 1
          %s211 = smul.addr %s210, 8
          %s212 = scalar_lea.vmem [#allocation5], %s211
          %213 = dma.done %s209, 128
        $region40: #{tpu_custom_call.1} parent=35 // pred_fallthru
          _
      $region36: #{tpu_custom_call.1} parent=5 // pred_fallthru
        _
    $region6: #{tpu_custom_call.1} parent=1 // loop_footer
      %s17 = sadd.s32 1, %s13
    $region7: #{tpu_custom_call.1} parent=1 // loop_footer_branch
      %12 = sbr.rel target = $region3
    $region8: #{tpu_custom_call.1} parent=1 // loop_exit
      _
    %214 = vsyncpa [#allocation3], 1
    %s215 = scalar_lea.sflag [#allocation3], 1
    %216 = vsyncpa %s215, 1
    %217 = vsyncpa [#allocation4], 1
    %s218 = scalar_lea.sflag [#allocation4], 1
    %219 = vsyncpa %s218, 1

</llo_original>
